<compile_context>
chip_gen: v7x
topology: tpu7x:2x2x1
jax: 0.10.0
libtpu: 0.0.40
codegen_flags: <defaults>
</compile_context>

<pallas_src>
import functools

import jax
import jax.numpy as jnp
from jax.experimental import pallas as pl
from jax.experimental.pallas import tpu as pltpu


def _round_up(x, m):
    return (x + m - 1) // m * m


def _default_tiling():
    """Pick (tile_n, vmem_limit_bytes) from the TPU generation, with fallbacks."""
    vmem_cap = 128 * 1024 * 1024
    try:
        get_info = getattr(pltpu, "get_tpu_info", None)
        if get_info is not None:
            info = get_info()
            vmem_cap = int(getattr(info, "vmem_capacity_bytes", vmem_cap))
    except Exception:  # pragma: no cover - conservative fallback off-TPU
        return 1024, None
    if vmem_cap <= 64 * 1024 * 1024:      # v7x: 64 MiB per TensorCore
        return 512, int(vmem_cap * 3 // 4)
    return 1024, min(int(vmem_cap * 3 // 4), 96 * 1024 * 1024)


def mol2dreams_kernel(
    x_ref,        # [tile_n, Fn]         node-feature tile (streamed over nodes)
    bidx_ref,     # [1, 1, tile_n] int32 graph id per node in this tile
    inv_cnt_ref,  # [B, 1] f32           exact 1 / nodes-per-graph (resident)
    g_ref,        # [B, Fg]              global features (resident)
    w_in_ref,     # [Fn, H]
    b_in_ref,     # [1, H]   f32
    w_g_ref,      # [Fg, H]
    b_g_ref,      # [1, H]   f32
    w_body_n_ref, # [H, H]   body weight acting on pooled node embeddings
    w_body_g_ref, # [H, H]   body weight acting on global embeddings
    b_body_ref,   # [1, H]   f32
    w_head_ref,   # [H, Dout_pad]        zero-padded to lane-dense width
    b_head_ref,   # [1, Dout_pad] f32
    out_ref,      # [B, Dout_pad] f32
    pooled_ref,   # scratch: [B, H] f32  segment-sum accumulator
    *,
    n_valid: int,     # true number of nodes (static)
    ragged: bool,     # whether the last tile reads out-of-bounds rows (static)
):
    i = pl.program_id(0)
    n_tiles = pl.num_programs(0)
    B = g_ref.shape[0]
    tile_n = x_ref.shape[0]
    mm_dtype = w_in_ref.dtype            # f32, or bf16 when use_bf16=True

    @pl.when(i == 0)
    def _():
        pooled_ref[...] = jnp.zeros_like(pooled_ref)

    # ---- input_layer on this node tile (MXU matmul + VPU relu) -------------
    x = x_ref[...]                                               # already mm_dtype
    if ragged:
        # Zero out rows past the true node count: the ragged last tile reads
        # undefined memory; 0 * out-of-range one-hot would otherwise be NaN.
        row_ids = i * tile_n + jax.lax.broadcasted_iota(jnp.int32, (tile_n, 1), 0)
        x = jnp.where(row_ids < n_valid, x, 0)
    node_emb = jnp.dot(x, w_in_ref[...], preferred_element_type=jnp.float32)
    node_emb = jnp.maximum(node_emb + b_in_ref[...], 0.0)        # [tile_n, H] f32

    # ---- body_layer part 1: segment-sum pooling via TRANSPOSED one-hot -----
    # onehot_t is built directly as [B, tile_n] in mm_dtype: the contraction
    # dim (tile_n) sits on LHS lanes / RHS sublanes so the dot feeds the MXU
    # with no XLU transpose and no extra cast.  Padded nodes carry graph id B
    # (out of range) -> all-zero one-hot column -> contribute nothing.
    bidx_row = bidx_ref[0]                                       # [1, tile_n] int32
    graph_iota = jax.lax.broadcasted_iota(jnp.int32, (B, tile_n), 0)
    onehot_t = (graph_iota == bidx_row).astype(mm_dtype)         # [B, tile_n]
    pooled_ref[...] += jnp.dot(onehot_t, node_emb.astype(mm_dtype),
                               preferred_element_type=jnp.float32)

    # ---- finalize on the last node tile (runs once per call) ---------------
    @pl.when(i == n_tiles - 1)
    def _():
        # exact mean: precomputed 1/count, no approx reciprocal
        pooled = pooled_ref[...] * inv_cnt_ref[...]              # [B, H] f32

        # global_input_layer
        g_emb = jnp.dot(g_ref[...], w_g_ref[...],
                        preferred_element_type=jnp.float32)
        g_emb = jnp.maximum(g_emb + b_g_ref[...], 0.0)           # [B, H] f32

        # body_layer part 2: concat([p, g]) @ W == p @ Wn + g @ Wg
        wdt = w_body_n_ref.dtype
        body = (
            jnp.dot(pooled.astype(wdt), w_body_n_ref[...],
                    preferred_element_type=jnp.float32)
            + jnp.dot(g_emb.astype(wdt), w_body_g_ref[...],
                      preferred_element_type=jnp.float32)
            + b_body_ref[...]
        )
        body = jnp.maximum(body, 0.0)                            # [B, H] f32

        # head_layer (lane-dense padded output -> unmasked stores)
        out = jnp.dot(body.astype(w_head_ref.dtype), w_head_ref[...],
                      preferred_element_type=jnp.float32)
        out_ref[...] = out + b_head_ref[...]                     # [B, Dout_pad]


def mol2dreams_forward(x, batch_idx, global_feats, params, *,
                       tile_n=None, use_bf16=False, vmem_limit_bytes=None):
    """Node-axis-tiled fused forward.

    tile_n: rows per node tile (rounded to a multiple of 8, clamped to the node
    count).  Defaults are generation-aware (smaller on 64 MiB-VMEM v7x).
    """
    n_nodes, f_node = x.shape
    b, f_glob = global_feats.shape
    h = params["w_in"].shape[1]
    d_out = params["w_head"].shape[1]

    if tile_n is None or vmem_limit_bytes is None:
        d_tile, d_vmem = _default_tiling()
        tile_n = d_tile if tile_n is None else tile_n
        vmem_limit_bytes = d_vmem if vmem_limit_bytes is None else vmem_limit_bytes

    mm_dtype = jnp.bfloat16 if use_bf16 else jnp.float32

    # ---- node-axis tiling: NO full pad copy of x ----------------------------
    # Clamp tile_n so a block never exceeds the array; the ragged tail tile is
    # masked inside the kernel instead of materializing a zero-padded copy.
    tile_n = max(8, (min(int(tile_n), n_nodes) // 8) * 8)
    x_in = x.astype(mm_dtype)          # no-op in f32; one fused cast in bf16.
    # TODO(synk): at production scale provide x already in bf16 upstream so
    #             even this cast copy disappears.
    if n_nodes < tile_n:               # tiny-input fallback: pad to one block
        pad = tile_n - n_nodes
        x_in = jnp.concatenate(
            [x_in, jnp.zeros((pad, f_node), x_in.dtype)], axis=0)
    n_rows = x_in.shape[0]
    n_tiles = pl.cdiv(n_rows, tile_n)
    n_pad = n_tiles * tile_n
    ragged = n_pad != n_nodes

    # Graph id per node, one lane-major row per tile; padded slots get id == b
    # (out of range) so their one-hot column is all zeros.
    bidx_p = jnp.full((n_pad,), b, jnp.int32).at[:n_nodes].set(
        batch_idx.astype(jnp.int32))
    bidx_rows = bidx_p.reshape(n_tiles, 1, tile_n)

    # Exact inverse segment counts, computed once on the tiny index array.
    counts = jax.ops.segment_sum(
        jnp.ones((n_nodes,), jnp.float32), batch_idx.astype(jnp.int32),
        num_segments=b)
    inv_counts = (1.0 / jnp.maximum(counts, 1.0)).reshape(b, 1)

    # ---- pre-cast weights ONCE (no per-tile casts inside the kernel) --------
    w_in = params["w_in"].astype(mm_dtype)
    w_g = params["w_g"].astype(mm_dtype)
    w_body_n = params["w_body_n"].astype(mm_dtype)
    w_body_g = params["w_body_g"].astype(mm_dtype)
    g_in = global_feats.astype(mm_dtype)

    # ---- lane-dense output: pad D_out to a multiple of 128 ------------------
    d_pad = _round_up(d_out, 128)
    w_head_p = jnp.zeros((h, d_pad), mm_dtype).at[:, :d_out].set(
        params["w_head"].astype(mm_dtype))
    b_head_p = jnp.zeros((1, d_pad), jnp.float32).at[:, :d_out].set(
        params["b_head"].astype(jnp.float32))

    kernel = functools.partial(
        mol2dreams_kernel, n_valid=n_nodes, ragged=bool(ragged))
    resident = lambda i: (0, 0)   # weights / globals / inv-counts stay resident

    out_padded = pl.pallas_call(
        kernel,
        out_shape=jax.ShapeDtypeStruct((b, d_pad), jnp.float32),
        grid_spec=pltpu.PrefetchScalarGridSpec(
            num_scalar_prefetch=0,
            grid=(n_tiles,),
            in_specs=[
                pl.BlockSpec((tile_n, f_node), lambda i: (i, 0)),    # x tiles
                pl.BlockSpec((1, 1, tile_n), lambda i: (i, 0, 0)),   # batch ids
                pl.BlockSpec((b, 1), resident),                      # 1/counts
                pl.BlockSpec((b, f_glob), resident),                 # globals
                pl.BlockSpec((f_node, h), resident),                 # w_in
                pl.BlockSpec((1, h), resident),                      # b_in
                pl.BlockSpec((f_glob, h), resident),                 # w_g
                pl.BlockSpec((1, h), resident),                      # b_g
                pl.BlockSpec((h, h), resident),                      # w_body_n
                pl.BlockSpec((h, h), resident),                      # w_body_g
                pl.BlockSpec((1, h), resident),                      # b_body
                pl.BlockSpec((h, d_pad), resident),                  # w_head
                pl.BlockSpec((1, d_pad), resident),                  # b_head
            ],
            out_specs=pl.BlockSpec((b, d_pad), resident),
            scratch_shapes=[
                pltpu.VMEM((b, h), jnp.float32),   # pooled segment sums
            ],
        ),
        compiler_params=pltpu.CompilerParams(
            dimension_semantics=("arbitrary",),    # node axis is a reduction
            vmem_limit_bytes=vmem_limit_bytes,
        ),
    )(
        x_in, bidx_rows, inv_counts, g_in,
        w_in, params["b_in"].astype(jnp.float32),
        w_g, params["b_g"].astype(jnp.float32),
        w_body_n, w_body_g, params["b_body"].astype(jnp.float32),
        w_head_p, b_head_p,
    )
    return out_padded[:, :d_out]


def reference_forward(x, batch_idx, global_feats, params, num_graphs):
    """Pure-JAX reference (mirrors the PyTorch composition)."""
    node_emb = jax.nn.relu(x @ params["w_in"] + params["b_in"])
    seg_sum = jax.ops.segment_sum(node_emb, batch_idx, num_segments=num_graphs)
    seg_cnt = jax.ops.segment_sum(
        jnp.ones((x.shape[0], 1), jnp.float32), batch_idx,
        num_segments=num_graphs)
    pooled = seg_sum / jnp.maximum(seg_cnt, 1.0)
    g_emb = jax.nn.relu(global_feats @ params["w_g"] + params["b_g"])
    body = jax.nn.relu(
        pooled @ params["w_body_n"] + g_emb @ params["w_body_g"] + params["b_body"])
    return body @ params["w_head"] + params["b_head"]


def init_params(key, f_node, f_glob, hidden, d_out):
    ks = jax.random.split(key, 6)
    scale = 0.1
    return {
        "w_in":     scale * jax.random.normal(ks[0], (f_node, hidden), jnp.float32),
        "b_in":     jnp.zeros((1, hidden), jnp.float32),
        "w_g":      scale * jax.random.normal(ks[1], (f_glob, hidden), jnp.float32),
        "b_g":      jnp.zeros((1, hidden), jnp.float32),
        "w_body_n": scale * jax.random.normal(ks[2], (hidden, hidden), jnp.float32),
        "w_body_g": scale * jax.random.normal(ks[3], (hidden, hidden), jnp.float32),
        "b_body":   scale * jax.random.normal(ks[4], (1, hidden), jnp.float32),
        "w_head":   scale * jax.random.normal(ks[5], (hidden, d_out), jnp.float32),
        "b_head":   jnp.zeros((1, d_out), jnp.float32),
    }


if __name__ == "__main__":
    # Small synthetic PyG-style batch:
    #   batch.x               -> node features     [N_nodes, F_node]
    #   batch.batch           -> graph assignment  [N_nodes]
    #   batch.global_features -> global features   [B, F_glob]
    N_NODES, F_NODE = 16, 8
    B, F_GLOB = 2, 8
    HIDDEN, D_OUT = 32, 16

    key = jax.random.PRNGKey(0)
    k_x, k_g, k_p = jax.random.split(key, 3)

    x = jax.random.normal(k_x, (N_NODES, F_NODE), jnp.float32)
    # first 10 nodes belong to graph 0, remaining 6 to graph 1
    batch_idx = jnp.concatenate(
        [jnp.zeros((10,), jnp.int32), jnp.ones((6,), jnp.int32)])
    global_feats = jax.random.normal(k_g, (B, F_GLOB), jnp.float32)

    params = init_params(k_p, F_NODE, F_GLOB, HIDDEN, D_OUT)

    # Test 1: tile_n=8 -> grid=(2,), exercises the accumulate / finalize path.
    out = mol2dreams_forward(x, batch_idx, global_feats, params,
                             tile_n=8, use_bf16=False)
    out = jax.block_until_ready(out)
    ref = reference_forward(x, batch_idx, global_feats, params, B)
    assert out.shape == (B, D_OUT)
    assert jnp.allclose(out, ref, atol=2e-3, rtol=2e-3), "mismatch vs JAX reference"

    # Test 2: ragged node count (13 nodes, tile_n=8) -> exercises the unpadded
    # streaming path with the in-kernel tail mask.
    N2 = 13
    x2 = x[:N2]
    batch_idx2 = jnp.concatenate(
        [jnp.zeros((7,), jnp.int32), jnp.ones((6,), jnp.int32)])
    out2 = mol2dreams_forward(x2, batch_idx2, global_feats, params,
                              tile_n=8, use_bf16=False)
    out2 = jax.block_until_ready(out2)
    ref2 = reference_forward(x2, batch_idx2, global_feats, params, B)
    assert out2.shape == (B, D_OUT)
    assert jnp.allclose(out2, ref2, atol=2e-3, rtol=2e-3), "ragged mismatch"

    print("KERNEL_OK")
</pallas_src>

<mosaic_0001>
module attributes {stable_mosaic.version = 11 : i64} {
  func.func @mol2dreams_kernel(%arg0: i32, %arg1: memref<8x8xf32, #tpu.memory_space<vmem>>, %arg2: memref<1x1x8xi32, #tpu.memory_space<vmem>>, %arg3: memref<2x1xf32, #tpu.memory_space<vmem>>, %arg4: memref<2x8xf32, #tpu.memory_space<vmem>>, %arg5: memref<8x32xf32, #tpu.memory_space<vmem>>, %arg6: memref<1x32xf32, #tpu.memory_space<vmem>>, %arg7: memref<8x32xf32, #tpu.memory_space<vmem>>, %arg8: memref<1x32xf32, #tpu.memory_space<vmem>>, %arg9: memref<32x32xf32, #tpu.memory_space<vmem>>, %arg10: memref<32x32xf32, #tpu.memory_space<vmem>>, %arg11: memref<1x32xf32, #tpu.memory_space<vmem>>, %arg12: memref<32x128xf32, #tpu.memory_space<vmem>>, %arg13: memref<1x128xf32, #tpu.memory_space<vmem>>, %arg14: memref<2x128xf32, #tpu.memory_space<vmem>>, %arg15: memref<2x32xf32, #tpu.memory_space<vmem>>) attributes {dimension_semantics = [#tpu.dimension_semantics<arbitrary>], iteration_bounds = array<i64: 2>, scalar_prefetch = 0 : i64, scratch_operands = 1 : i64, tpu.core_type = #tpu.core_type<tc>, window_params = [{transform_indices = @transform_0, window_bounds = array<i64: 8, 8>}, {transform_indices = @transform_1, window_bounds = array<i64: 1, 1, 8>}, {pipeline_mode = #tpu.pipeline_mode<synchronous>, transform_indices = @transform_2, window_bounds = array<i64: 2, 1>}, {pipeline_mode = #tpu.pipeline_mode<synchronous>, transform_indices = @transform_3, window_bounds = array<i64: 2, 8>}, {pipeline_mode = #tpu.pipeline_mode<synchronous>, transform_indices = @transform_4, window_bounds = array<i64: 8, 32>}, {pipeline_mode = #tpu.pipeline_mode<synchronous>, transform_indices = @transform_5, window_bounds = array<i64: 1, 32>}, {pipeline_mode = #tpu.pipeline_mode<synchronous>, transform_indices = @transform_6, window_bounds = array<i64: 8, 32>}, {pipeline_mode = #tpu.pipeline_mode<synchronous>, transform_indices = @transform_7, window_bounds = array<i64: 1, 32>}, {pipeline_mode = #tpu.pipeline_mode<synchronous>, transform_indices = @transform_8, window_bounds = array<i64: 32, 32>}, {pipeline_mode = #tpu.pipeline_mode<synchronous>, transform_indices = @transform_9, window_bounds = array<i64: 32, 32>}, {pipeline_mode = #tpu.pipeline_mode<synchronous>, transform_indices = @transform_10, window_bounds = array<i64: 1, 32>}, {pipeline_mode = #tpu.pipeline_mode<synchronous>, transform_indices = @transform_11, window_bounds = array<i64: 32, 128>}, {pipeline_mode = #tpu.pipeline_mode<synchronous>, transform_indices = @transform_12, window_bounds = array<i64: 1, 128>}, {pipeline_mode = #tpu.pipeline_mode<synchronous>, transform_indices = @transform_13, window_bounds = array<i64: 2, 128>}]} {
    %c0_i32 = arith.constant 0 : i32
    %0 = arith.cmpi eq, %arg0, %c0_i32 : i32
    %1 = arith.extui %0 : i1 to i32
    %c0_i32_0 = arith.constant 0 : i32
    %2 = arith.cmpi ne, %1, %c0_i32_0 : i32
    scf.if %2 {
      %cst_16 = arith.constant 0.000000e+00 : f32
      %25 = vector.broadcast %cst_16 : f32 to vector<2x32xf32>
      %c0_17 = arith.constant 0 : index
      %c0_18 = arith.constant 0 : index
      %26 = vector.load %arg15[%c0_17, %c0_18] : memref<2x32xf32, #tpu.memory_space<vmem>>, vector<2x32xf32>
      tpu.vector_store %arg15[%c0_17, %c0_18], %25 {strides = array<i32>} : memref<2x32xf32, #tpu.memory_space<vmem>>, vector<2x32xf32>,
    } else {
    }
    %c0 = arith.constant 0 : index
    %c0_1 = arith.constant 0 : index
    %3 = vector.load %arg1[%c0, %c0_1] : memref<8x8xf32, #tpu.memory_space<vmem>>, vector<8x8xf32>
    %c0_2 = arith.constant 0 : index
    %c0_3 = arith.constant 0 : index
    %4 = vector.load %arg5[%c0_2, %c0_3] : memref<8x32xf32, #tpu.memory_space<vmem>>, vector<8x32xf32>
    %cst = arith.constant dense<0.000000e+00> : vector<8x32xf32>
    %5 = tpu.matmul %3, %4, %cst {dimension_numbers = #tpu.dot_dimension_numbers<[1], [0], [0], [1], [0, 0, 1, 1], [], []>} : vector<8x8xf32>, vector<8x32xf32>, vector<8x32xf32> -> vector<8x32xf32>
    %c0_4 = arith.constant 0 : index
    %c0_5 = arith.constant 0 : index
    %6 = vector.load %arg6[%c0_4, %c0_5] : memref<1x32xf32, #tpu.memory_space<vmem>>, vector<1x32xf32>
    %7 = vector.broadcast %6 : vector<1x32xf32> to vector<8x32xf32>
    %8 = arith.addf %5, %7 : vector<8x32xf32>
    %cst_6 = arith.constant 0.000000e+00 : f32
    %9 = vector.broadcast %cst_6 : f32 to vector<8x32xf32>
    %10 = arith.maximumf %8, %9 : vector<8x32xf32>
    %c0_7 = arith.constant 0 : index
    %c0_8 = arith.constant 0 : index
    %c0_9 = arith.constant 0 : index
    %11 = vector.load %arg2[%c0_7, %c0_8, %c0_9] : memref<1x1x8xi32, #tpu.memory_space<vmem>>, vector<1x1x8xi32>
    %12 = vector.shape_cast %11 : vector<1x1x8xi32> to vector<1x8xi32>
    %13 = tpu.iota {dimensions = array<i32: 0>} : vector<2x8xi32>
    %14 = vector.broadcast %12 : vector<1x8xi32> to vector<2x8xi32>
    %15 = arith.cmpi eq, %13, %14 : vector<2x8xi32>
    %16 = arith.extui %15 : vector<2x8xi1> to vector<2x8xi32>
    %17 = arith.sitofp %16 : vector<2x8xi32> to vector<2x8xf32>
    %c0_10 = arith.constant 0 : index
    %c0_11 = arith.constant 0 : index
    %18 = vector.load %arg15[%c0_10, %c0_11] : memref<2x32xf32, #tpu.memory_space<vmem>>, vector<2x32xf32>
    %cst_12 = arith.constant dense<0.000000e+00> : vector<2x32xf32>
    %19 = tpu.matmul %17, %10, %cst_12 {dimension_numbers = #tpu.dot_dimension_numbers<[1], [0], [0], [1], [0, 0, 1, 1], [], []>} : vector<2x8xf32>, vector<8x32xf32>, vector<2x32xf32> -> vector<2x32xf32>
    %20 = arith.addf %18, %19 : vector<2x32xf32>
    %c0_13 = arith.constant 0 : index
    %c0_14 = arith.constant 0 : index
    %21 = vector.load %arg15[%c0_13, %c0_14] : memref<2x32xf32, #tpu.memory_space<vmem>>, vector<2x32xf32>
    tpu.vector_store %arg15[%c0_13, %c0_14], %20 {strides = array<i32>} : memref<2x32xf32, #tpu.memory_space<vmem>>, vector<2x32xf32>,
    %c1_i32 = arith.constant 1 : i32
    %22 = arith.cmpi eq, %arg0, %c1_i32 : i32
    %23 = arith.extui %22 : i1 to i32
    %c0_i32_15 = arith.constant 0 : i32
    %24 = arith.cmpi ne, %23, %c0_i32_15 : i32
    scf.if %24 {
      %c0_16 = arith.constant 0 : index
      %c0_17 = arith.constant 0 : index
      %25 = vector.load %arg15[%c0_16, %c0_17] : memref<2x32xf32, #tpu.memory_space<vmem>>, vector<2x32xf32>
      %c0_18 = arith.constant 0 : index
      %c0_19 = arith.constant 0 : index
      %26 = vector.load %arg3[%c0_18, %c0_19] : memref<2x1xf32, #tpu.memory_space<vmem>>, vector<2x1xf32>
      %27 = vector.broadcast %26 : vector<2x1xf32> to vector<2x32xf32>
      %28 = arith.mulf %25, %27 : vector<2x32xf32>
      %c0_20 = arith.constant 0 : index
      %c0_21 = arith.constant 0 : index
      %29 = vector.load %arg4[%c0_20, %c0_21] : memref<2x8xf32, #tpu.memory_space<vmem>>, vector<2x8xf32>
      %c0_22 = arith.constant 0 : index
      %c0_23 = arith.constant 0 : index
      %30 = vector.load %arg7[%c0_22, %c0_23] : memref<8x32xf32, #tpu.memory_space<vmem>>, vector<8x32xf32>
      %cst_24 = arith.constant dense<0.000000e+00> : vector<2x32xf32>
      %31 = tpu.matmul %29, %30, %cst_24 {dimension_numbers = #tpu.dot_dimension_numbers<[1], [0], [0], [1], [0, 0, 1, 1], [], []>} : vector<2x8xf32>, vector<8x32xf32>, vector<2x32xf32> -> vector<2x32xf32>
      %c0_25 = arith.constant 0 : index
      %c0_26 = arith.constant 0 : index
      %32 = vector.load %arg8[%c0_25, %c0_26] : memref<1x32xf32, #tpu.memory_space<vmem>>, vector<1x32xf32>
      %33 = vector.broadcast %32 : vector<1x32xf32> to vector<2x32xf32>
      %34 = arith.addf %31, %33 : vector<2x32xf32>
      %cst_27 = arith.constant 0.000000e+00 : f32
      %35 = vector.broadcast %cst_27 : f32 to vector<2x32xf32>
      %36 = arith.maximumf %34, %35 : vector<2x32xf32>
      %c0_28 = arith.constant 0 : index
      %c0_29 = arith.constant 0 : index
      %37 = vector.load %arg9[%c0_28, %c0_29] : memref<32x32xf32, #tpu.memory_space<vmem>>, vector<32x32xf32>
      %cst_30 = arith.constant dense<0.000000e+00> : vector<2x32xf32>
      %38 = tpu.matmul %28, %37, %cst_30 {dimension_numbers = #tpu.dot_dimension_numbers<[1], [0], [0], [1], [0, 0, 1, 1], [], []>} : vector<2x32xf32>, vector<32x32xf32>, vector<2x32xf32> -> vector<2x32xf32>
      %c0_31 = arith.constant 0 : index
      %c0_32 = arith.constant 0 : index
      %39 = vector.load %arg10[%c0_31, %c0_32] : memref<32x32xf32, #tpu.memory_space<vmem>>, vector<32x32xf32>
      %cst_33 = arith.constant dense<0.000000e+00> : vector<2x32xf32>
      %40 = tpu.matmul %36, %39, %cst_33 {dimension_numbers = #tpu.dot_dimension_numbers<[1], [0], [0], [1], [0, 0, 1, 1], [], []>} : vector<2x32xf32>, vector<32x32xf32>, vector<2x32xf32> -> vector<2x32xf32>
      %41 = arith.addf %38, %40 : vector<2x32xf32>
      %c0_34 = arith.constant 0 : index
      %c0_35 = arith.constant 0 : index
      %42 = vector.load %arg11[%c0_34, %c0_35] : memref<1x32xf32, #tpu.memory_space<vmem>>, vector<1x32xf32>
      %43 = vector.broadcast %42 : vector<1x32xf32> to vector<2x32xf32>
      %44 = arith.addf %41, %43 : vector<2x32xf32>
      %cst_36 = arith.constant 0.000000e+00 : f32
      %45 = vector.broadcast %cst_36 : f32 to vector<2x32xf32>
      %46 = arith.maximumf %44, %45 : vector<2x32xf32>
      %c0_37 = arith.constant 0 : index
      %c0_38 = arith.constant 0 : index
      %47 = vector.load %arg12[%c0_37, %c0_38] : memref<32x128xf32, #tpu.memory_space<vmem>>, vector<32x128xf32>
      %cst_39 = arith.constant dense<0.000000e+00> : vector<2x128xf32>
      %48 = tpu.matmul %46, %47, %cst_39 {dimension_numbers = #tpu.dot_dimension_numbers<[1], [0], [0], [1], [0, 0, 1, 1], [], []>} : vector<2x32xf32>, vector<32x128xf32>, vector<2x128xf32> -> vector<2x128xf32>
      %c0_40 = arith.constant 0 : index
      %c0_41 = arith.constant 0 : index
      %49 = vector.load %arg13[%c0_40, %c0_41] : memref<1x128xf32, #tpu.memory_space<vmem>>, vector<1x128xf32>
      %50 = vector.broadcast %49 : vector<1x128xf32> to vector<2x128xf32>
      %51 = arith.addf %48, %50 : vector<2x128xf32>
      %c0_42 = arith.constant 0 : index
      %c0_43 = arith.constant 0 : index
      %52 = vector.load %arg14[%c0_42, %c0_43] : memref<2x128xf32, #tpu.memory_space<vmem>>, vector<2x128xf32>
      tpu.vector_store %arg14[%c0_42, %c0_43], %51 {strides = array<i32>} : memref<2x128xf32, #tpu.memory_space<vmem>>, vector<2x128xf32>,
    } else {
    }
    return
  }
  func.func @transform_0(%arg0: i32) -> (i32, i32) {
    %c0_i32 = arith.constant 0 : i32
    %c0_i32_0 = arith.constant 0 : i32
    return %arg0, %c0_i32 : i32, i32
  }
  func.func @transform_1(%arg0: i32) -> (i32, i32, i32) {
    %c0_i32 = arith.constant 0 : i32
    %c0_i32_0 = arith.constant 0 : i32
    %c0_i32_1 = arith.constant 0 : i32
    return %arg0, %c0_i32, %c0_i32_0 : i32, i32, i32
  }
  func.func @transform_2(%arg0: i32) -> (i32, i32) {
    %c0_i32 = arith.constant 0 : i32
    %c0_i32_0 = arith.constant 0 : i32
    %c0_i32_1 = arith.constant 0 : i32
    return %c0_i32, %c0_i32_0 : i32, i32
  }
  func.func @transform_3(%arg0: i32) -> (i32, i32) {
    %c0_i32 = arith.constant 0 : i32
    %c0_i32_0 = arith.constant 0 : i32
    %c0_i32_1 = arith.constant 0 : i32
    return %c0_i32, %c0_i32_0 : i32, i32
  }
  func.func @transform_4(%arg0: i32) -> (i32, i32) {
    %c0_i32 = arith.constant 0 : i32
    %c0_i32_0 = arith.constant 0 : i32
    %c0_i32_1 = arith.constant 0 : i32
    return %c0_i32, %c0_i32_0 : i32, i32
  }
  func.func @transform_5(%arg0: i32) -> (i32, i32) {
    %c0_i32 = arith.constant 0 : i32
    %c0_i32_0 = arith.constant 0 : i32
    %c0_i32_1 = arith.constant 0 : i32
    return %c0_i32, %c0_i32_0 : i32, i32
  }
  func.func @transform_6(%arg0: i32) -> (i32, i32) {
    %c0_i32 = arith.constant 0 : i32
    %c0_i32_0 = arith.constant 0 : i32
    %c0_i32_1 = arith.constant 0 : i32
    return %c0_i32, %c0_i32_0 : i32, i32
  }
  func.func @transform_7(%arg0: i32) -> (i32, i32) {
    %c0_i32 = arith.constant 0 : i32
    %c0_i32_0 = arith.constant 0 : i32
    %c0_i32_1 = arith.constant 0 : i32
    return %c0_i32, %c0_i32_0 : i32, i32
  }
  func.func @transform_8(%arg0: i32) -> (i32, i32) {
    %c0_i32 = arith.constant 0 : i32
    %c0_i32_0 = arith.constant 0 : i32
    %c0_i32_1 = arith.constant 0 : i32
    return %c0_i32, %c0_i32_0 : i32, i32
  }
  func.func @transform_9(%arg0: i32) -> (i32, i32) {
    %c0_i32 = arith.constant 0 : i32
    %c0_i32_0 = arith.constant 0 : i32
    %c0_i32_1 = arith.constant 0 : i32
    return %c0_i32, %c0_i32_0 : i32, i32
  }
  func.func @transform_10(%arg0: i32) -> (i32, i32) {
    %c0_i32 = arith.constant 0 : i32
    %c0_i32_0 = arith.constant 0 : i32
    %c0_i32_1 = arith.constant 0 : i32
    return %c0_i32, %c0_i32_0 : i32, i32
  }
  func.func @transform_11(%arg0: i32) -> (i32, i32) {
    %c0_i32 = arith.constant 0 : i32
    %c0_i32_0 = arith.constant 0 : i32
    %c0_i32_1 = arith.constant 0 : i32
    return %c0_i32, %c0_i32_0 : i32, i32
  }
  func.func @transform_12(%arg0: i32) -> (i32, i32) {
    %c0_i32 = arith.constant 0 : i32
    %c0_i32_0 = arith.constant 0 : i32
    %c0_i32_1 = arith.constant 0 : i32
    return %c0_i32, %c0_i32_0 : i32, i32
  }
  func.func @transform_13(%arg0: i32) -> (i32, i32) {
    %c0_i32 = arith.constant 0 : i32
    %c0_i32_0 = arith.constant 0 : i32
    %c0_i32_1 = arith.constant 0 : i32
    return %c0_i32, %c0_i32_0 : i32, i32
  }
}

</mosaic_0001>

<llo_original>
// kernel: tpu_custom_call.1
$region0: #{tpu_custom_call.1}
  #allocation0 [shape = 'u32[]', space=smem, size = 0x4, offset = 0x4, fixed_abs, tag = 'smem constant byte address 0x4 - core index']
  #allocation1 [shape = 'u32[144,128]{1,0:T(1,128)}', space=vmem, size = 0x12000, scoped, tag = 'internal scratch']
  #allocation2 [shape = 'f32[2,32]{1,0:T(2,128)}', space=vmem, size = 0x400, scoped, tag = 'scratch operand']
  %s0 = inlined_call_operand.vmem [shape: f32[16,8], index: 0, kind: input, shape index: {}]
  %s1 = inlined_call_operand.hbm [shape: s32[2,1,8], index: 1, kind: input, shape index: {}]
  %s2 = inlined_call_operand.vmem [shape: f32[2,1], index: 2, kind: input, shape index: {}]
  %s3 = inlined_call_operand.hbm [shape: f32[2,8], index: 3, kind: input, shape index: {}]
  %s4 = inlined_call_operand.hbm [shape: f32[8,32], index: 4, kind: input, shape index: {}]
  %s5 = inlined_call_operand.vmem [shape: f32[1,32], index: 5, kind: input, shape index: {}]
  %s6 = inlined_call_operand.hbm [shape: f32[8,32], index: 6, kind: input, shape index: {}]
  %s7 = inlined_call_operand.hbm [shape: f32[1,32], index: 7, kind: input, shape index: {}]
  %s8 = inlined_call_operand.vmem [shape: f32[32,32], index: 8, kind: input, shape index: {}]
  %s9 = inlined_call_operand.hbm [shape: f32[32,32], index: 9, kind: input, shape index: {}]
  %s10 = inlined_call_operand.hbm [shape: f32[1,32], index: 10, kind: input, shape index: {}]
  %s11 = inlined_call_operand.vmem [shape: f32[32,128], index: 11, kind: input, shape index: {}]
  %s12 = inlined_call_operand.vmem [shape: f32[1,128], index: 12, kind: input, shape index: {}]
  %s13 = inlined_call_operand.hbm [shape: f32[2,128], index: 13, kind: output, shape index: {}]
  %s14 = sld [smem:[#allocation0]]
  $region121: #{tpu_custom_call.1} parent=0
    _
  %s16 = ssub.s32 1, %s14
  %s17 = scalar_select 0, %s16, %s14
  $region1: #{tpu_custom_call.1} parent=0
    #allocation3 [shape = 'u8[1024]{0}', space=vmem, size = 0x400, scoped, tag = 'input window, operand 1']
    #allocation4 [shape = 's32[2]{0}', space=sflag, size = 0x8, scoped, tag = 'scoped memory for tpu_custom_call.1']
    #allocation5 [shape = 's32[2]{0}', space=sflag, size = 0x8, scoped, tag = 'scoped memory for tpu_custom_call.1']
    #allocation6 [shape = 'u8[1024]{0}', space=vmem, size = 0x400, scoped, tag = 'input window, operand 3, single buffered']
    #allocation7 [shape = 's32[1]{0}', space=sflag, size = 0x4, scoped, tag = 'scoped memory for tpu_custom_call.1']
    #allocation8 [shape = 'u8[4096]{0}', space=vmem, size = 0x1000, scoped, tag = 'input window, operand 4, single buffered']
    #allocation9 [shape = 'u8[4096]{0}', space=vmem, size = 0x1000, scoped, tag = 'input window, operand 6, single buffered']
    #allocation10 [shape = 's32[1]{0}', space=sflag, size = 0x4, scoped, tag = 'scoped memory for tpu_custom_call.1']
    #allocation11 [shape = 'u8[512]{0}', space=vmem, size = 0x400, scoped, tag = 'input window, operand 7, single buffered']
    #allocation12 [shape = 'u8[16384]{0}', space=vmem, size = 0x4000, scoped, tag = 'input window, operand 9, single buffered']
    #allocation13 [shape = 's32[1]{0}', space=sflag, size = 0x4, scoped, tag = 'scoped memory for tpu_custom_call.1']
    #allocation14 [shape = 'u8[512]{0}', space=vmem, size = 0x400, scoped, tag = 'input window, operand 10, single buffered']
    #allocation15 [shape = 'u8[1024]{0}', space=vmem, size = 0x400, scoped, tag = 'output window, operand 0, single buffered']
    %18 = vsyncpa [#allocation4], 0
    %s19 = scalar_lea.sflag [#allocation4], 1
    %20 = vsyncpa %s19, 0
    %21 = vsyncpa [#allocation7], 0
    %22 = vsyncpa [#allocation10], 0
    %23 = vsyncpa [#allocation13], 0
    %24 = vsyncpa [#allocation5], 0
    loop: start=0, step=1, limit=4
    $region2: #{tpu_custom_call.1} parent=1 // loop_pre_header
      _
    $region3: #{tpu_custom_call.1} parent=1 // loop_header
      %s26 = sphi 0, %s30
      %p27 = scmp.ge.s32.totalorder %s26, 4
      %s36 = sphi 0, %s38
      %s39 = sphi 0, %s36
      %s40 = sphi 0, %s39
      %s56 = sphi 0, %s40
      %s62 = sphi 0, %s64
      %s65 = sphi 0, %s62
      %s66 = sphi 0, %s65
      %s82 = sphi 0, %s66
      %s86 = sphi 0, %s86
      %s88 = sphi 0, %s86
      %s89 = sphi 0, %s88
      %s103 = sphi 0, %s89
      %s107 = sphi 0, %s107
      %s109 = sphi 0, %s107
      %s110 = sphi 0, %s109
      %s124 = sphi 0, %s110
      %s128 = sphi 0, %s128
      %s130 = sphi 0, %s128
      %s131 = sphi 0, %s130
      %s145 = sphi 0, %s131
      %s149 = sphi 0, %s149
      %s151 = sphi 0, %s149
      %s152 = sphi 0, %s151
      %s166 = sphi 0, %s152
      %s170 = sphi 0, %s170
      %s172 = sphi 0, %s170
      %s173 = sphi 0, %s172
      %s187 = sphi 0, %s173
      %s191 = sphi 0, %s191
      %s193 = sphi 0, %s191
      %s194 = sphi 0, %s193
      %s208 = sphi 0, %s194
      %s212 = sphi 0, %s212
      %s214 = sphi 0, %s212
      %s215 = sphi 0, %s214
      %s229 = sphi 0, %s215
      %s233 = sphi 0, %s233
      %s235 = sphi 0, %s233
      %s236 = sphi 0, %s235
      %s250 = sphi 0, %s236
      %s254 = sphi 0, %s254
      %s256 = sphi 0, %s254
      %s257 = sphi 0, %s256
      %s271 = sphi 0, %s257
      %s275 = sphi 0, %s275
      %s277 = sphi 0, %s275
      %s278 = sphi 0, %s277
      %s292 = sphi 0, %s278
      %s296 = sphi 0, %s296
      %s298 = sphi 0, %s296
      %s299 = sphi 0, %s298
      %s313 = sphi 0, %s299
      %s317 = sphi 0, %s317
      %s319 = sphi 0, %s317
      %s320 = sphi 0, %s319
      %s334 = sphi 0, %s320
    $region4: #{tpu_custom_call.1} parent=1 // loop_header_branch
      %29 = sbr.rel (%p27) target = $region8
    $region5: #{tpu_custom_call.1} parent=1 // loop_body
      %s31 = ssub.s32 %s26, 1
      %s32 = ssub.s32 %s26, 2
      %s33 = sadd.s32 %s26, 1
      %s34 = ssub.s32 %s26, %s33
      %p35 = scmp.eq.s32.totalorder %s34, 0
      %s37 = sadd.s32 %s36, 1
      %s38 = scalar_select %p35, %s36, %s37
      %p41 = pneg %p35
      %p42 = scmp.eq.s32.totalorder %s26, 1
      %p43 = por %p41, %p42
      %p44 = scmp.ne.s32.totalorder %s36, %s39
      %p45 = scmp.eq.s32.totalorder %s26, 0
      %p46 = por %p44, %p45
      %p47 = scmp.ne.s32.totalorder %s36, %s39
      %p48 = scmp.eq.s32.totalorder %s31, 1
      %p49 = por %p47, %p48
      %p50 = scmp.ne.s32.totalorder %s39, %s40
      %p51 = scmp.eq.s32.totalorder %s31, 0
      %p52 = por %p50, %p51
      %p53 = scmp.ne.s32.totalorder %s39, %s40
      %p54 = scmp.eq.s32.totalorder %s32, 1
      %p55 = por %p53, %p54
      %p57 = scmp.ne.s32.totalorder %s40, %s56
      %p58 = scmp.eq.s32.totalorder %s32, 0
      %p59 = por %p57, %p58
      %s60 = ssub.s32 %s26, %s33
      %p61 = scmp.eq.s32.totalorder %s60, 0
      %s63 = sadd.s32 %s62, 1
      %s64 = scalar_select %p61, %s62, %s63
      %p67 = pneg %p61
      %p68 = scmp.eq.s32.totalorder %s26, 1
      %p69 = por %p67, %p68
      %p70 = scmp.ne.s32.totalorder %s62, %s65
      %p71 = scmp.eq.s32.totalorder %s26, 0
      %p72 = por %p70, %p71
      %p73 = scmp.ne.s32.totalorder %s62, %s65
      %p74 = scmp.eq.s32.totalorder %s31, 1
      %p75 = por %p73, %p74
      %p76 = scmp.ne.s32.totalorder %s65, %s66
      %p77 = scmp.eq.s32.totalorder %s31, 0
      %p78 = por %p76, %p77
      %p79 = scmp.ne.s32.totalorder %s65, %s66
      %p80 = scmp.eq.s32.totalorder %s32, 1
      %p81 = por %p79, %p80
      %p83 = scmp.ne.s32.totalorder %s66, %s82
      %p84 = scmp.eq.s32.totalorder %s32, 0
      %p85 = por %p83, %p84
      %s87 = sadd.s32 %s86, 1
      %p90 = scmp.eq.s32.totalorder %s26, 1
      %p91 = scmp.ne.s32.totalorder %s86, %s88
      %p92 = scmp.eq.s32.totalorder %s26, 0
      %p93 = por %p91, %p92
      %p94 = scmp.ne.s32.totalorder %s86, %s88
      %p95 = scmp.eq.s32.totalorder %s31, 1
      %p96 = por %p94, %p95
      %p97 = scmp.ne.s32.totalorder %s88, %s89
      %p98 = scmp.eq.s32.totalorder %s31, 0
      %p99 = por %p97, %p98
      %p100 = scmp.ne.s32.totalorder %s88, %s89
      %p101 = scmp.eq.s32.totalorder %s32, 1
      %p102 = por %p100, %p101
      %p104 = scmp.ne.s32.totalorder %s89, %s103
      %p105 = scmp.eq.s32.totalorder %s32, 0
      %p106 = por %p104, %p105
      %s108 = sadd.s32 %s107, 1
      %p111 = scmp.eq.s32.totalorder %s26, 1
      %p112 = scmp.ne.s32.totalorder %s107, %s109
      %p113 = scmp.eq.s32.totalorder %s26, 0
      %p114 = por %p112, %p113
      %p115 = scmp.ne.s32.totalorder %s107, %s109
      %p116 = scmp.eq.s32.totalorder %s31, 1
      %p117 = por %p115, %p116
      %p118 = scmp.ne.s32.totalorder %s109, %s110
      %p119 = scmp.eq.s32.totalorder %s31, 0
      %p120 = por %p118, %p119
      %p121 = scmp.ne.s32.totalorder %s109, %s110
      %p122 = scmp.eq.s32.totalorder %s32, 1
      %p123 = por %p121, %p122
      %p125 = scmp.ne.s32.totalorder %s110, %s124
      %p126 = scmp.eq.s32.totalorder %s32, 0
      %p127 = por %p125, %p126
      %s129 = sadd.s32 %s128, 1
      %p132 = scmp.eq.s32.totalorder %s26, 1
      %p133 = scmp.ne.s32.totalorder %s128, %s130
      %p134 = scmp.eq.s32.totalorder %s26, 0
      %p135 = por %p133, %p134
      %p136 = scmp.ne.s32.totalorder %s128, %s130
      %p137 = scmp.eq.s32.totalorder %s31, 1
      %p138 = por %p136, %p137
      %p139 = scmp.ne.s32.totalorder %s130, %s131
      %p140 = scmp.eq.s32.totalorder %s31, 0
      %p141 = por %p139, %p140
      %p142 = scmp.ne.s32.totalorder %s130, %s131
      %p143 = scmp.eq.s32.totalorder %s32, 1
      %p144 = por %p142, %p143
      %p146 = scmp.ne.s32.totalorder %s131, %s145
      %p147 = scmp.eq.s32.totalorder %s32, 0
      %p148 = por %p146, %p147
      %s150 = sadd.s32 %s149, 1
      %p153 = scmp.eq.s32.totalorder %s26, 1
      %p154 = scmp.ne.s32.totalorder %s149, %s151
      %p155 = scmp.eq.s32.totalorder %s26, 0
      %p156 = por %p154, %p155
      %p157 = scmp.ne.s32.totalorder %s149, %s151
      %p158 = scmp.eq.s32.totalorder %s31, 1
      %p159 = por %p157, %p158
      %p160 = scmp.ne.s32.totalorder %s151, %s152
      %p161 = scmp.eq.s32.totalorder %s31, 0
      %p162 = por %p160, %p161
      %p163 = scmp.ne.s32.totalorder %s151, %s152
      %p164 = scmp.eq.s32.totalorder %s32, 1
      %p165 = por %p163, %p164
      %p167 = scmp.ne.s32.totalorder %s152, %s166
      %p168 = scmp.eq.s32.totalorder %s32, 0
      %p169 = por %p167, %p168
      %s171 = sadd.s32 %s170, 1
      %p174 = scmp.eq.s32.totalorder %s26, 1
      %p175 = scmp.ne.s32.totalorder %s170, %s172
      %p176 = scmp.eq.s32.totalorder %s26, 0
      %p177 = por %p175, %p176
      %p178 = scmp.ne.s32.totalorder %s170, %s172
      %p179 = scmp.eq.s32.totalorder %s31, 1
      %p180 = por %p178, %p179
      %p181 = scmp.ne.s32.totalorder %s172, %s173
      %p182 = scmp.eq.s32.totalorder %s31, 0
      %p183 = por %p181, %p182
      %p184 = scmp.ne.s32.totalorder %s172, %s173
      %p185 = scmp.eq.s32.totalorder %s32, 1
      %p186 = por %p184, %p185
      %p188 = scmp.ne.s32.totalorder %s173, %s187
      %p189 = scmp.eq.s32.totalorder %s32, 0
      %p190 = por %p188, %p189
      %s192 = sadd.s32 %s191, 1
      %p195 = scmp.eq.s32.totalorder %s26, 1
      %p196 = scmp.ne.s32.totalorder %s191, %s193
      %p197 = scmp.eq.s32.totalorder %s26, 0
      %p198 = por %p196, %p197
      %p199 = scmp.ne.s32.totalorder %s191, %s193
      %p200 = scmp.eq.s32.totalorder %s31, 1
      %p201 = por %p199, %p200
      %p202 = scmp.ne.s32.totalorder %s193, %s194
      %p203 = scmp.eq.s32.totalorder %s31, 0
      %p204 = por %p202, %p203
      %p205 = scmp.ne.s32.totalorder %s193, %s194
      %p206 = scmp.eq.s32.totalorder %s32, 1
      %p207 = por %p205, %p206
      %p209 = scmp.ne.s32.totalorder %s194, %s208
      %p210 = scmp.eq.s32.totalorder %s32, 0
      %p211 = por %p209, %p210
      %s213 = sadd.s32 %s212, 1
      %p216 = scmp.eq.s32.totalorder %s26, 1
      %p217 = scmp.ne.s32.totalorder %s212, %s214
      %p218 = scmp.eq.s32.totalorder %s26, 0
      %p219 = por %p217, %p218
      %p220 = scmp.ne.s32.totalorder %s212, %s214
      %p221 = scmp.eq.s32.totalorder %s31, 1
      %p222 = por %p220, %p221
      %p223 = scmp.ne.s32.totalorder %s214, %s215
      %p224 = scmp.eq.s32.totalorder %s31, 0
      %p225 = por %p223, %p224
      %p226 = scmp.ne.s32.totalorder %s214, %s215
      %p227 = scmp.eq.s32.totalorder %s32, 1
      %p228 = por %p226, %p227
      %p230 = scmp.ne.s32.totalorder %s215, %s229
      %p231 = scmp.eq.s32.totalorder %s32, 0
      %p232 = por %p230, %p231
      %s234 = sadd.s32 %s233, 1
      %p237 = scmp.eq.s32.totalorder %s26, 1
      %p238 = scmp.ne.s32.totalorder %s233, %s235
      %p239 = scmp.eq.s32.totalorder %s26, 0
      %p240 = por %p238, %p239
      %p241 = scmp.ne.s32.totalorder %s233, %s235
      %p242 = scmp.eq.s32.totalorder %s31, 1
      %p243 = por %p241, %p242
      %p244 = scmp.ne.s32.totalorder %s235, %s236
      %p245 = scmp.eq.s32.totalorder %s31, 0
      %p246 = por %p244, %p245
      %p247 = scmp.ne.s32.totalorder %s235, %s236
      %p248 = scmp.eq.s32.totalorder %s32, 1
      %p249 = por %p247, %p248
      %p251 = scmp.ne.s32.totalorder %s236, %s250
      %p252 = scmp.eq.s32.totalorder %s32, 0
      %p253 = por %p251, %p252
      %s255 = sadd.s32 %s254, 1
      %p258 = scmp.eq.s32.totalorder %s26, 1
      %p259 = scmp.ne.s32.totalorder %s254, %s256
      %p260 = scmp.eq.s32.totalorder %s26, 0
      %p261 = por %p259, %p260
      %p262 = scmp.ne.s32.totalorder %s254, %s256
      %p263 = scmp.eq.s32.totalorder %s31, 1
      %p264 = por %p262, %p263
      %p265 = scmp.ne.s32.totalorder %s256, %s257
      %p266 = scmp.eq.s32.totalorder %s31, 0
      %p267 = por %p265, %p266
      %p268 = scmp.ne.s32.totalorder %s256, %s257
      %p269 = scmp.eq.s32.totalorder %s32, 1
      %p270 = por %p268, %p269
      %p272 = scmp.ne.s32.totalorder %s257, %s271
      %p273 = scmp.eq.s32.totalorder %s32, 0
      %p274 = por %p272, %p273
      %s276 = sadd.s32 %s275, 1
      %p279 = scmp.eq.s32.totalorder %s26, 1
      %p280 = scmp.ne.s32.totalorder %s275, %s277
      %p281 = scmp.eq.s32.totalorder %s26, 0
      %p282 = por %p280, %p281
      %p283 = scmp.ne.s32.totalorder %s275, %s277
      %p284 = scmp.eq.s32.totalorder %s31, 1
      %p285 = por %p283, %p284
      %p286 = scmp.ne.s32.totalorder %s277, %s278
      %p287 = scmp.eq.s32.totalorder %s31, 0
      %p288 = por %p286, %p287
      %p289 = scmp.ne.s32.totalorder %s277, %s278
      %p290 = scmp.eq.s32.totalorder %s32, 1
      %p291 = por %p289, %p290
      %p293 = scmp.ne.s32.totalorder %s278, %s292
      %p294 = scmp.eq.s32.totalorder %s32, 0
      %p295 = por %p293, %p294
      %s297 = sadd.s32 %s296, 1
      %p300 = scmp.eq.s32.totalorder %s26, 1
      %p301 = scmp.ne.s32.totalorder %s296, %s298
      %p302 = scmp.eq.s32.totalorder %s26, 0
      %p303 = por %p301, %p302
      %p304 = scmp.ne.s32.totalorder %s296, %s298
      %p305 = scmp.eq.s32.totalorder %s31, 1
      %p306 = por %p304, %p305
      %p307 = scmp.ne.s32.totalorder %s298, %s299
      %p308 = scmp.eq.s32.totalorder %s31, 0
      %p309 = por %p307, %p308
      %p310 = scmp.ne.s32.totalorder %s298, %s299
      %p311 = scmp.eq.s32.totalorder %s32, 1
      %p312 = por %p310, %p311
      %p314 = scmp.ne.s32.totalorder %s299, %s313
      %p315 = scmp.eq.s32.totalorder %s32, 0
      %p316 = por %p314, %p315
      %s318 = sadd.s32 %s317, 1
      %p321 = scmp.eq.s32.totalorder %s26, 1
      %p322 = scmp.ne.s32.totalorder %s317, %s319
      %p323 = scmp.eq.s32.totalorder %s26, 0
      %p324 = por %p322, %p323
      %p325 = scmp.ne.s32.totalorder %s317, %s319
      %p326 = scmp.eq.s32.totalorder %s31, 1
      %p327 = por %p325, %p326
      %p328 = scmp.ne.s32.totalorder %s319, %s320
      %p329 = scmp.eq.s32.totalorder %s31, 0
      %p330 = por %p328, %p329
      %p331 = scmp.ne.s32.totalorder %s319, %s320
      %p332 = scmp.eq.s32.totalorder %s32, 1
      %p333 = por %p331, %p332
      %p335 = scmp.ne.s32.totalorder %s320, %s334
      %p336 = scmp.eq.s32.totalorder %s32, 0
      %p337 = por %p335, %p336
      %p338 = scmp.le.s32.totalorder 1, %s26
      %p339 = scmp.lt.s32.totalorder %s26, 3
      %p340 = pnand %p338, %p339
      %p341 = pneg %p340
      // Predicated region
      $region9: #{tpu_custom_call.1} parent=5 // pred_check
        _
      $region10: #{tpu_custom_call.1} parent=5 // pred_check_branch
        %343 = sbr.rel (%p340) target = $region12
      $region11: #{tpu_custom_call.1} parent=5 // pred_region
        %s344 = ssub.s32 %s26, 1
        // Predicated region
        $region13: #{tpu_custom_call.1} parent=11 // pred_check
          %p345 = pneg %p99
        $region14: #{tpu_custom_call.1} parent=11 // pred_check_branch
          %347 = sbr.rel (%p345) target = $region16
        $region15: #{tpu_custom_call.1} parent=11 // pred_region
          _
        $region16: #{tpu_custom_call.1} parent=11 // pred_fallthru
          _
        // Predicated region
        $region17: #{tpu_custom_call.1} parent=11 // pred_check
          %p348 = pneg %p120
        $region18: #{tpu_custom_call.1} parent=11 // pred_check_branch
          %350 = sbr.rel (%p348) target = $region20
        $region19: #{tpu_custom_call.1} parent=11 // pred_region
          %s352 = ssub.s32 32, 32
          %353 = vsyncadd [#allocation7], %s352
          %s355 = sshll.u32 [#allocation6], 4
          %s356 = int_to_ptr.vmem [resolvable:$true] %s355
          %358 = dma.hbm_to_vmem [thread:$0]  %s3, 32, %s356, [#allocation7]
        $region20: #{tpu_custom_call.1} parent=11 // pred_fallthru
          _
        // Predicated region
        $region21: #{tpu_custom_call.1} parent=11 // pred_check
          %p359 = pneg %p141
        $region22: #{tpu_custom_call.1} parent=11 // pred_check_branch
          %361 = sbr.rel (%p359) target = $region24
        $region23: #{tpu_custom_call.1} parent=11 // pred_region
          %s363 = ssub.s32 128, 128
          %364 = vsyncadd [#allocation7], %s363
          %s366 = sshll.u32 [#allocation8], 4
          %s367 = int_to_ptr.vmem [resolvable:$true] %s366
          %369 = dma.hbm_to_vmem [thread:$0]  %s4, 128, %s367, [#allocation7]
        $region24: #{tpu_custom_call.1} parent=11 // pred_fallthru
          _
        // Predicated region
        $region25: #{tpu_custom_call.1} parent=11 // pred_check
          %p370 = pneg %p162
        $region26: #{tpu_custom_call.1} parent=11 // pred_check_branch
          %372 = sbr.rel (%p370) target = $region28
        $region27: #{tpu_custom_call.1} parent=11 // pred_region
          _
        $region28: #{tpu_custom_call.1} parent=11 // pred_fallthru
          _
        // Predicated region
        $region29: #{tpu_custom_call.1} parent=11 // pred_check
          %p373 = pneg %p183
        $region30: #{tpu_custom_call.1} parent=11 // pred_check_branch
          %375 = sbr.rel (%p373) target = $region32
        $region31: #{tpu_custom_call.1} parent=11 // pred_region
          %s377 = ssub.s32 128, 128
          %378 = vsyncadd [#allocation10], %s377
          %s380 = sshll.u32 [#allocation9], 4
          %s381 = int_to_ptr.vmem [resolvable:$true] %s380
          %383 = dma.hbm_to_vmem [thread:$0]  %s6, 128, %s381, [#allocation10]
        $region32: #{tpu_custom_call.1} parent=11 // pred_fallthru
          _
        // Predicated region
        $region33: #{tpu_custom_call.1} parent=11 // pred_check
          %p384 = pneg %p204
        $region34: #{tpu_custom_call.1} parent=11 // pred_check_branch
          %386 = sbr.rel (%p384) target = $region36
        $region35: #{tpu_custom_call.1} parent=11 // pred_region
          %s388 = ssub.s32 16, 16
          %389 = vsyncadd [#allocation10], %s388
          %s391 = sshll.u32 [#allocation11], 4
          %s392 = int_to_ptr.vmem [resolvable:$true] %s391
          %394 = dma.hbm_to_vmem [thread:$0]  %s7, 16, %s392, [#allocation10]
        $region36: #{tpu_custom_call.1} parent=11 // pred_fallthru
          _
        // Predicated region
        $region37: #{tpu_custom_call.1} parent=11 // pred_check
          %p395 = pneg %p225
        $region38: #{tpu_custom_call.1} parent=11 // pred_check_branch
          %397 = sbr.rel (%p395) target = $region40
        $region39: #{tpu_custom_call.1} parent=11 // pred_region
          _
        $region40: #{tpu_custom_call.1} parent=11 // pred_fallthru
          _
        // Predicated region
        $region41: #{tpu_custom_call.1} parent=11 // pred_check
          %p398 = pneg %p246
        $region42: #{tpu_custom_call.1} parent=11 // pred_check_branch
          %400 = sbr.rel (%p398) target = $region44
        $region43: #{tpu_custom_call.1} parent=11 // pred_region
          %s402 = ssub.s32 512, 512
          %403 = vsyncadd [#allocation13], %s402
          %s404 = sshll.u32 [#allocation12], 4
          %s405 = int_to_ptr.vmem [resolvable:$true] %s404
          %410 = dma.hbm_to_vmem [thread:$0]  %s9, 512, %s405, [#allocation13], 128, 128, 8
        $region44: #{tpu_custom_call.1} parent=11 // pred_fallthru
          _
        // Predicated region
        $region45: #{tpu_custom_call.1} parent=11 // pred_check
          %p411 = pneg %p267
        $region46: #{tpu_custom_call.1} parent=11 // pred_check_branch
          %413 = sbr.rel (%p411) target = $region48
        $region47: #{tpu_custom_call.1} parent=11 // pred_region
          %s415 = ssub.s32 16, 16
          %416 = vsyncadd [#allocation13], %s415
          %s418 = sshll.u32 [#allocation14], 4
          %s419 = int_to_ptr.vmem [resolvable:$true] %s418
          %421 = dma.hbm_to_vmem [thread:$0]  %s10, 16, %s419, [#allocation13]
        $region48: #{tpu_custom_call.1} parent=11 // pred_fallthru
          _
        // Predicated region
        $region49: #{tpu_custom_call.1} parent=11 // pred_check
          %p422 = pneg %p288
        $region50: #{tpu_custom_call.1} parent=11 // pred_check_branch
          %424 = sbr.rel (%p422) target = $region52
        $region51: #{tpu_custom_call.1} parent=11 // pred_region
          _
        $region52: #{tpu_custom_call.1} parent=11 // pred_fallthru
          _
        // Predicated region
        $region53: #{tpu_custom_call.1} parent=11 // pred_check
          %p425 = pneg %p309
        $region54: #{tpu_custom_call.1} parent=11 // pred_check_branch
          %427 = sbr.rel (%p425) target = $region56
        $region55: #{tpu_custom_call.1} parent=11 // pred_region
          _
        $region56: #{tpu_custom_call.1} parent=11 // pred_fallthru
          _
      $region12: #{tpu_custom_call.1} parent=5 // pred_fallthru
        _
      %p428 = scmp.lt.s32.totalorder %s26, 2
      // Predicated region
      $region57: #{tpu_custom_call.1} parent=5 // pred_check
        %p429 = pneg %p428
      $region58: #{tpu_custom_call.1} parent=5 // pred_check_branch
        %431 = sbr.rel (%p429) target = $region60
      $region59: #{tpu_custom_call.1} parent=5 // pred_region
        // Predicated region
        $region61: #{tpu_custom_call.1} parent=59 // pred_check
          %p432 = pneg %p46
        $region62: #{tpu_custom_call.1} parent=59 // pred_check_branch
          %434 = sbr.rel (%p432) target = $region64
        $region63: #{tpu_custom_call.1} parent=59 // pred_region
          %p435 = scmp.lt.s32.totalorder %s26, 1
          %s436 = scalar_select %p435, %s26, 1
          %s437 = smul.addr %s436, 8
          %s438 = scalar_lea.vmem %s0, %s437
        $region64: #{tpu_custom_call.1} parent=59 // pred_fallthru
          _
        // Predicated region
        $region65: #{tpu_custom_call.1} parent=59 // pred_check
          %p439 = pneg %p72
        $region66: #{tpu_custom_call.1} parent=59 // pred_check_branch
          %441 = sbr.rel (%p439) target = $region68
        $region67: #{tpu_custom_call.1} parent=59 // pred_region
          %s442 = sand.u32 %s62, 1
          %s443 = scalar_lea.sflag [#allocation4], %s442
          %s444 = sand.u32 %s62, 1
          %s445 = scalar_lea.vmem [#allocation3], %s444
          %s447 = ssub.s32 16, 16
          %448 = vsyncadd %s443, %s447
          %s449 = smul.addr %s26, 16
          %s450 = scalar_lea.hbm %s1, %s449
          %s452 = sshll.u32 %s445, 4
          %s453 = int_to_ptr.vmem [resolvable:$true] %s452
          %455 = dma.hbm_to_vmem [thread:$0]  %s450, 16, %s453, %s443
        $region68: #{tpu_custom_call.1} parent=59 // pred_fallthru
          _
      $region60: #{tpu_custom_call.1} parent=5 // pred_fallthru
        _
      %p456 = scmp.le.s32.totalorder 1, %s26
      %p457 = scmp.lt.s32.totalorder %s26, 3
      %p458 = pnand %p456, %p457
      %p459 = pneg %p458
      // Predicated region
      $region69: #{tpu_custom_call.1} parent=5 // pred_check
        _
      $region70: #{tpu_custom_call.1} parent=5 // pred_check_branch
        %461 = sbr.rel (%p458) target = $region72
      $region71: #{tpu_custom_call.1} parent=5 // pred_region
        %s462 = ssub.s32 %s26, 1
        %s463 = sand.u32 %s65, 1
        %s464 = scalar_lea.sflag [#allocation4], %s463
        %s465 = sand.u32 %s65, 1
        %s466 = scalar_lea.vmem [#allocation3], %s465
        // Predicated region
        $region73: #{tpu_custom_call.1} parent=71 // pred_check
          %p467 = pneg %p78
        $region74: #{tpu_custom_call.1} parent=71 // pred_check_branch
          %469 = sbr.rel (%p467) target = $region76
        $region75: #{tpu_custom_call.1} parent=71 // pred_region
          %470 = dma.done %s464, 16
        $region76: #{tpu_custom_call.1} parent=71 // pred_fallthru
          _
        // Predicated region
        $region77: #{tpu_custom_call.1} parent=71 // pred_check
          %p471 = pneg %p120
        $region78: #{tpu_custom_call.1} parent=71 // pred_check_branch
          %473 = sbr.rel (%p471) target = $region80
        $region79: #{tpu_custom_call.1} parent=71 // pred_region
          %474 = dma.done [#allocation7], 32
        $region80: #{tpu_custom_call.1} parent=71 // pred_fallthru
          _
        // Predicated region
        $region81: #{tpu_custom_call.1} parent=71 // pred_check
          %p475 = pneg %p141
        $region82: #{tpu_custom_call.1} parent=71 // pred_check_branch
          %477 = sbr.rel (%p475) target = $region84
        $region83: #{tpu_custom_call.1} parent=71 // pred_region
          %478 = dma.done [#allocation7], 128
        $region84: #{tpu_custom_call.1} parent=71 // pred_fallthru
          _
        // Predicated region
        $region85: #{tpu_custom_call.1} parent=71 // pred_check
          %p479 = pneg %p183
        $region86: #{tpu_custom_call.1} parent=71 // pred_check_branch
          %481 = sbr.rel (%p479) target = $region88
        $region87: #{tpu_custom_call.1} parent=71 // pred_region
          %482 = dma.done [#allocation10], 128
        $region88: #{tpu_custom_call.1} parent=71 // pred_fallthru
          _
        // Predicated region
        $region89: #{tpu_custom_call.1} parent=71 // pred_check
          %p483 = pneg %p204
        $region90: #{tpu_custom_call.1} parent=71 // pred_check_branch
          %485 = sbr.rel (%p483) target = $region92
        $region91: #{tpu_custom_call.1} parent=71 // pred_region
          %486 = dma.done [#allocation10], 16
        $region92: #{tpu_custom_call.1} parent=71 // pred_fallthru
          _
        // Predicated region
        $region93: #{tpu_custom_call.1} parent=71 // pred_check
          %p487 = pneg %p246
        $region94: #{tpu_custom_call.1} parent=71 // pred_check_branch
          %489 = sbr.rel (%p487) target = $region96
        $region95: #{tpu_custom_call.1} parent=71 // pred_region
          %490 = dma.done [#allocation13], 512
        $region96: #{tpu_custom_call.1} parent=71 // pred_fallthru
          _
        // Predicated region
        $region97: #{tpu_custom_call.1} parent=71 // pred_check
          %p491 = pneg %p267
        $region98: #{tpu_custom_call.1} parent=71 // pred_check_branch
          %493 = sbr.rel (%p491) target = $region100
        $region99: #{tpu_custom_call.1} parent=71 // pred_region
          %494 = dma.done [#allocation13], 16
        $region100: #{tpu_custom_call.1} parent=71 // pred_fallthru
          _
        %p495 = scmp.lt.s32.totalorder %s31, 1
        %s496 = scalar_select %p495, %s31, 1
        %s497 = smul.addr %s496, 8
        %s498 = scalar_lea.vmem %s0, %s497
        %p499 = pneg %p52
        %p500 = pneg %p49
        %s501 = sand.u32 %s65, 1
        %s502 = scalar_lea.sflag [#allocation4], %s501
        %s503 = sand.u32 %s65, 1
        %s504 = scalar_lea.vmem [#allocation3], %s503
        %p505 = pneg %p78
        %p506 = pneg %p75
        %p507 = pneg %p99
        %p508 = pneg %p96
        %p509 = pneg %p120
        %p510 = pneg %p117
        %p511 = pneg %p141
        %p512 = pneg %p138
        %p513 = pneg %p162
        %p514 = pneg %p159
        %p515 = pneg %p183
        %p516 = pneg %p180
        %p517 = pneg %p204
        %p518 = pneg %p201
        %p519 = pneg %p225
        %p520 = pneg %p222
        %p521 = pneg %p246
        %p522 = pneg %p243
        %p523 = pneg %p267
        %p524 = pneg %p264
        %p525 = pneg %p288
        %p526 = pneg %p285
        %p527 = pneg %p309
        %p528 = pneg %p306
        %p529 = pneg %p330
        %p530 = pneg %p327
        %p531 = scmp.lt.s32.totalorder %s31, 1
        %s532 = scalar_select %p531, %s31, 1
        %s533 = smul.addr %s532, 8
        %s534 = scalar_lea.vmem %s0, %s533
        %p535 = scmp.eq.s32.totalorder %s31, 0
        // Predicated region
        $region101: #{tpu_custom_call.1} parent=71 // pred_check
          %p536 = pneg %p535
        $region102: #{tpu_custom_call.1} parent=71 // pred_check_branch
          %538 = sbr.rel (%p536) target = $region104
        $region103: #{tpu_custom_call.1} parent=71 // pred_region
          %vm539 = vcmask 254976
          %540 = vst.msk [vmem:[#allocation2] sm:$0x3] %vm539, 0.0
        $region104: #{tpu_custom_call.1} parent=71 // pred_fallthru
          _
        %v541 = vld [vmem:[%s534] sm:$0xff]
        %v542 = vld [vmem:[#allocation8] sm:$0xff]
        %v543 = vld [vmem:[%s5] sm:$0x1]
        %v545 = vlaneseq
        %v546 = vshrl.u32 %v545, 7
        %v547 = vsub.s32 0, %v546
        %v548 = vrot.slane %v543, %v547
        %vm550 = vcmask 64512
        %v552 = vsel %vm550, %v541, 0
        %554 = vmatprep.subr.mxu0 0.0
        %555 = vmatpush1.msra.mxu0 %v542
        %556 = vmatprep.subr.mxu0 0.0
        %557 = vmatpush1.msra.mxu0 0.0
        %558 = vmatprep.subr.mxu0 0.0
        %559 = vmatpush1.msra.mxu0 0.0
        %560 = vmatprep.subr.mxu0 0.0
        %561 = vmatpush1.msra.mxu0 0.0
        %562 = vmatprep.subr.mxu0 0.0
        %563 = vmatpush1.msra.mxu0 0.0
        %564 = vmatprep.subr.mxu0 0.0
        %565 = vmatpush1.msra.mxu0 0.0
        %566 = vmatprep.subr.mxu0 0.0
        %567 = vmatpush1.msra.mxu0 0.0
        %568 = vmatprep.subr.mxu0 0.0
        %569 = vmatpush1.msra.mxu0 0.0
        %570 = vmatprep.subr.mxu0 0.0
        %571 = vmatpush1.msra.mxu0 0.0
        %572 = vmatprep.subr.mxu0 0.0
        %573 = vmatpush1.msra.mxu0 0.0
        %574 = vmatprep.subr.mxu0 0.0
        %575 = vmatpush1.msra.mxu0 0.0
        %576 = vmatprep.subr.mxu0 0.0
        %577 = vmatpush1.msra.mxu0 0.0
        %578 = vmatprep.subr.mxu0 0.0
        %579 = vmatpush1.msra.mxu0 0.0
        %580 = vmatprep.subr.mxu0 0.0
        %581 = vmatpush1.msra.mxu0 0.0
        %582 = vmatprep.subr.mxu0 0.0
        %583 = vmatpush1.msra.mxu0 0.0
        %584 = vmatprep.subr.mxu0 0.0
        %585 = vmatpush1.msra.mxu0 0.0
        %586 = vmatprep.subr.mxu0 0.0
        %587 = vmatpush1.msra.mxu0 0.0
        %588 = vmatprep.subr.mxu0 0.0
        %589 = vmatpush1.msra.mxu0 0.0
        %590 = vmatprep.subr.mxu0 0.0
        %591 = vmatpush1.msra.mxu0 0.0
        %592 = vmatprep.subr.mxu0 0.0
        %593 = vmatpush1.msra.mxu0 0.0
        %594 = vmatprep.subr.mxu0 0.0
        %595 = vmatpush1.msra.mxu0 0.0
        %596 = vmatprep.subr.mxu0 0.0
        %597 = vmatpush1.msra.mxu0 0.0
        %598 = vmatprep.subr.mxu0 0.0
        %599 = vmatpush1.msra.mxu0 0.0
        %600 = vmatprep.subr.mxu0 0.0
        %601 = vmatpush1.msra.mxu0 0.0
        %602 = vmatprep.subr.mxu0 0.0
        %603 = vmatpush1.msra.mxu0 0.0
        %604 = vmatprep.subr.mxu0 0.0
        %605 = vmatpush1.msra.mxu0 0.0
        %606 = vmatprep.subr.mxu0 0.0
        %607 = vmatpush1.msra.mxu0 0.0
        %608 = vmatprep.subr.mxu0 0.0
        %609 = vmatpush1.msra.mxu0 0.0
        %610 = vmatprep.subr.mxu0 0.0
        %611 = vmatpush1.msra.mxu0 0.0
        %612 = vmatprep.subr.mxu0 0.0
        %613 = vmatpush1.msra.mxu0 0.0
        %614 = vmatprep.subr.mxu0 0.0
        %615 = vmatpush1.msra.mxu0 0.0
        %616 = vmatprep.subr.mxu0 0.0
        %617 = vmatpush1.msra.mxu0 0.0
        %618 = vmatprep.mubr.f32.mxu0 0.0
        %619 = vmatmul.mubr.f32.gmra.mrb[0].mxu0 %v552
        %v620 = vpop.f32.mrb[0].mxu0
        %v621 = vadd.f32 %v548, %v620
        %v622 = vpop.f32.mrb[0].mxu0
        %623 = vdwg.mxu0
        %v624 = vmax.f32 %v621, 0.0
        %v625 = vld [vmem:[%s466] sm:$0x1]
        %v626 = vlaneseq
        %v627 = vshrl.u32 %v626, 7
        %v628 = vlaneseq
        %v629 = vshrl.u32 %v628, 7
        %v630 = vsub.s32 0, %v629
        %v631 = vrot.slane %v625, %v630
        %vm632 = vcmp.eq.s32.totalorder %v627, %v631
        %v633 = vsel %vm632, 1, 0
        %v634 = vcvt.s32.f32 %v633
        %v635 = vld [vmem:[#allocation2] sm:$0x3]
        %v637 = vsel %vm550, %v634, 0
        %639 = vmatprep.subr.mxu0 0.0
        %640 = vmatpush1.msra.mxu0 %v624
        %641 = vmatprep.subr.mxu0 0.0
        %642 = vmatpush1.msra.mxu0 0.0
        %643 = vmatprep.subr.mxu0 0.0
        %644 = vmatpush1.msra.mxu0 0.0
        %645 = vmatprep.subr.mxu0 0.0
        %646 = vmatpush1.msra.mxu0 0.0
        %647 = vmatprep.subr.mxu0 0.0
        %648 = vmatpush1.msra.mxu0 0.0
        %649 = vmatprep.subr.mxu0 0.0
        %650 = vmatpush1.msra.mxu0 0.0
        %651 = vmatprep.subr.mxu0 0.0
        %652 = vmatpush1.msra.mxu0 0.0
        %653 = vmatprep.subr.mxu0 0.0
        %654 = vmatpush1.msra.mxu0 0.0
        %655 = vmatprep.subr.mxu0 0.0
        %656 = vmatpush1.msra.mxu0 0.0
        %657 = vmatprep.subr.mxu0 0.0
        %658 = vmatpush1.msra.mxu0 0.0
        %659 = vmatprep.subr.mxu0 0.0
        %660 = vmatpush1.msra.mxu0 0.0
        %661 = vmatprep.subr.mxu0 0.0
        %662 = vmatpush1.msra.mxu0 0.0
        %663 = vmatprep.subr.mxu0 0.0
        %664 = vmatpush1.msra.mxu0 0.0
        %665 = vmatprep.subr.mxu0 0.0
        %666 = vmatpush1.msra.mxu0 0.0
        %667 = vmatprep.subr.mxu0 0.0
        %668 = vmatpush1.msra.mxu0 0.0
        %669 = vmatprep.subr.mxu0 0.0
        %670 = vmatpush1.msra.mxu0 0.0
        %671 = vmatprep.subr.mxu0 0.0
        %672 = vmatpush1.msra.mxu0 0.0
        %673 = vmatprep.subr.mxu0 0.0
        %674 = vmatpush1.msra.mxu0 0.0
        %675 = vmatprep.subr.mxu0 0.0
        %676 = vmatpush1.msra.mxu0 0.0
        %677 = vmatprep.subr.mxu0 0.0
        %678 = vmatpush1.msra.mxu0 0.0
        %679 = vmatprep.subr.mxu0 0.0
        %680 = vmatpush1.msra.mxu0 0.0
        %681 = vmatprep.subr.mxu0 0.0
        %682 = vmatpush1.msra.mxu0 0.0
        %683 = vmatprep.subr.mxu0 0.0
        %684 = vmatpush1.msra.mxu0 0.0
        %685 = vmatprep.subr.mxu0 0.0
        %686 = vmatpush1.msra.mxu0 0.0
        %687 = vmatprep.subr.mxu0 0.0
        %688 = vmatpush1.msra.mxu0 0.0
        %689 = vmatprep.subr.mxu0 0.0
        %690 = vmatpush1.msra.mxu0 0.0
        %691 = vmatprep.subr.mxu0 0.0
        %692 = vmatpush1.msra.mxu0 0.0
        %693 = vmatprep.subr.mxu0 0.0
        %694 = vmatpush1.msra.mxu0 0.0
        %695 = vmatprep.subr.mxu0 0.0
        %696 = vmatpush1.msra.mxu0 0.0
        %697 = vmatprep.subr.mxu0 0.0
        %698 = vmatpush1.msra.mxu0 0.0
        %699 = vmatprep.subr.mxu0 0.0
        %700 = vmatpush1.msra.mxu0 0.0
        %701 = vmatprep.subr.mxu0 0.0
        %702 = vmatpush1.msra.mxu0 0.0
        %703 = vmatprep.mubr.f32.mxu0 0.0
        %704 = vmatmul.mubr.f32.gmra.mrb[0].mxu0 %v637
        %v705 = vpop.f32.mrb[0].mxu0
        %v706 = vadd.f32 0.0, %v705
        %v707 = vpop.f32.mrb[0].mxu0
        %708 = vdwg.mxu0
        %v709 = vadd.f32 %v635, %v706
        %vm710 = vcmask 254976
        %711 = vst.msk [vmem:[#allocation2] sm:$0x3] %vm710, %v709
        %p712 = scmp.eq.s32.totalorder %s31, 1
        // Predicated region
        $region105: #{tpu_custom_call.1} parent=71 // pred_check
          %p713 = pneg %p712
        $region106: #{tpu_custom_call.1} parent=71 // pred_check_branch
          %715 = sbr.rel (%p713) target = $region108
        $region107: #{tpu_custom_call.1} parent=71 // pred_region
          %v716 = vld [vmem:[#allocation2] sm:$0x3]
          %v717 = vld [vmem:[%s2] sm:$0x3]
          %719 = vset.pattern.permute.xlu0 0
          %720 = vperm.xlu0 %719, %v717
          %v721 = vpop.permute.xlu0 %720
          %v723 = vmul.f32 %v716, %v721
          %v724 = vld [vmem:[#allocation6] sm:$0x3]
          %v725 = vld [vmem:[#allocation9] sm:$0xff]
          %v726 = vld [vmem:[#allocation11] sm:$0x1]
          %v728 = vlaneseq
          %v729 = vshrl.u32 %v728, 7
          %v730 = vsub.s32 0, %v729
          %v731 = vrot.slane %v726, %v730
          %v734 = vsel %vm550, %v724, 0
          %736 = vmatprep.subr.mxu0 0.0
          %737 = vmatpush1.msra.mxu0 %v725
          %738 = vmatprep.subr.mxu0 0.0
          %739 = vmatpush1.msra.mxu0 0.0
          %740 = vmatprep.subr.mxu0 0.0
          %741 = vmatpush1.msra.mxu0 0.0
          %742 = vmatprep.subr.mxu0 0.0
          %743 = vmatpush1.msra.mxu0 0.0
          %744 = vmatprep.subr.mxu0 0.0
          %745 = vmatpush1.msra.mxu0 0.0
          %746 = vmatprep.subr.mxu0 0.0
          %747 = vmatpush1.msra.mxu0 0.0
          %748 = vmatprep.subr.mxu0 0.0
          %749 = vmatpush1.msra.mxu0 0.0
          %750 = vmatprep.subr.mxu0 0.0
          %751 = vmatpush1.msra.mxu0 0.0
          %752 = vmatprep.subr.mxu0 0.0
          %753 = vmatpush1.msra.mxu0 0.0
          %754 = vmatprep.subr.mxu0 0.0
          %755 = vmatpush1.msra.mxu0 0.0
          %756 = vmatprep.subr.mxu0 0.0
          %757 = vmatpush1.msra.mxu0 0.0
          %758 = vmatprep.subr.mxu0 0.0
          %759 = vmatpush1.msra.mxu0 0.0
          %760 = vmatprep.subr.mxu0 0.0
          %761 = vmatpush1.msra.mxu0 0.0
          %762 = vmatprep.subr.mxu0 0.0
          %763 = vmatpush1.msra.mxu0 0.0
          %764 = vmatprep.subr.mxu0 0.0
          %765 = vmatpush1.msra.mxu0 0.0
          %766 = vmatprep.subr.mxu0 0.0
          %767 = vmatpush1.msra.mxu0 0.0
          %768 = vmatprep.subr.mxu0 0.0
          %769 = vmatpush1.msra.mxu0 0.0
          %770 = vmatprep.subr.mxu0 0.0
          %771 = vmatpush1.msra.mxu0 0.0
          %772 = vmatprep.subr.mxu0 0.0
          %773 = vmatpush1.msra.mxu0 0.0
          %774 = vmatprep.subr.mxu0 0.0
          %775 = vmatpush1.msra.mxu0 0.0
          %776 = vmatprep.subr.mxu0 0.0
          %777 = vmatpush1.msra.mxu0 0.0
          %778 = vmatprep.subr.mxu0 0.0
          %779 = vmatpush1.msra.mxu0 0.0
          %780 = vmatprep.subr.mxu0 0.0
          %781 = vmatpush1.msra.mxu0 0.0
          %782 = vmatprep.subr.mxu0 0.0
          %783 = vmatpush1.msra.mxu0 0.0
          %784 = vmatprep.subr.mxu0 0.0
          %785 = vmatpush1.msra.mxu0 0.0
          %786 = vmatprep.subr.mxu0 0.0
          %787 = vmatpush1.msra.mxu0 0.0
          %788 = vmatprep.subr.mxu0 0.0
          %789 = vmatpush1.msra.mxu0 0.0
          %790 = vmatprep.subr.mxu0 0.0
          %791 = vmatpush1.msra.mxu0 0.0
          %792 = vmatprep.subr.mxu0 0.0
          %793 = vmatpush1.msra.mxu0 0.0
          %794 = vmatprep.subr.mxu0 0.0
          %795 = vmatpush1.msra.mxu0 0.0
          %796 = vmatprep.subr.mxu0 0.0
          %797 = vmatpush1.msra.mxu0 0.0
          %798 = vmatprep.subr.mxu0 0.0
          %799 = vmatpush1.msra.mxu0 0.0
          %800 = vmatprep.mubr.f32.mxu0 0.0
          %801 = vmatmul.mubr.f32.gmra.mrb[0].mxu0 %v734
          %v802 = vpop.f32.mrb[0].mxu0
          %v803 = vadd.f32 %v731, %v802
          %v804 = vpop.f32.mrb[0].mxu0
          %805 = vdwg.mxu0
          %v806 = vmax.f32 %v803, 0.0
          %v807 = vld [vmem:[%s8] sm:$0xff]
          %v808 = vld [vmem:[%s8 + $0x8] sm:$0xff]
          %v809 = vld [vmem:[%s8 + $0x10] sm:$0xff]
          %v810 = vld [vmem:[%s8 + $0x18] sm:$0xff]
          %v811 = vld [vmem:[#allocation12] sm:$0xff]
          %v812 = vld [vmem:[#allocation12 + $0x8] sm:$0xff]
          %v813 = vld [vmem:[#allocation12 + $0x10] sm:$0xff]
          %v814 = vld [vmem:[#allocation12 + $0x18] sm:$0xff]
          %vm815 = vcmask 261120
          %v817 = vsel %vm815, %v806, 0
          %819 = vmatprep.subr.mxu0 0.0
          %820 = vmatpush1.msra.mxu0 %v811
          %821 = vmatprep.subr.mxu0 0.0
          %822 = vmatpush1.msra.mxu0 %v812
          %823 = vmatprep.subr.mxu0 0.0
          %824 = vmatpush1.msra.mxu0 %v813
          %825 = vmatprep.subr.mxu0 0.0
          %826 = vmatpush1.msra.mxu0 %v814
          %827 = vmatprep.subr.mxu0 0.0
          %828 = vmatpush1.msra.mxu0 0.0
          %829 = vmatprep.subr.mxu0 0.0
          %830 = vmatpush1.msra.mxu0 0.0
          %831 = vmatprep.subr.mxu0 0.0
          %832 = vmatpush1.msra.mxu0 0.0
          %833 = vmatprep.subr.mxu0 0.0
          %834 = vmatpush1.msra.mxu0 0.0
          %835 = vmatprep.subr.mxu0 0.0
          %836 = vmatpush1.msra.mxu0 0.0
          %837 = vmatprep.subr.mxu0 0.0
          %838 = vmatpush1.msra.mxu0 0.0
          %839 = vmatprep.subr.mxu0 0.0
          %840 = vmatpush1.msra.mxu0 0.0
          %841 = vmatprep.subr.mxu0 0.0
          %842 = vmatpush1.msra.mxu0 0.0
          %843 = vmatprep.subr.mxu0 0.0
          %844 = vmatpush1.msra.mxu0 0.0
          %845 = vmatprep.subr.mxu0 0.0
          %846 = vmatpush1.msra.mxu0 0.0
          %847 = vmatprep.subr.mxu0 0.0
          %848 = vmatpush1.msra.mxu0 0.0
          %849 = vmatprep.subr.mxu0 0.0
          %850 = vmatpush1.msra.mxu0 0.0
          %851 = vmatprep.subr.mxu0 0.0
          %852 = vmatpush1.msra.mxu0 0.0
          %853 = vmatprep.subr.mxu0 0.0
          %854 = vmatpush1.msra.mxu0 0.0
          %855 = vmatprep.subr.mxu0 0.0
          %856 = vmatpush1.msra.mxu0 0.0
          %857 = vmatprep.subr.mxu0 0.0
          %858 = vmatpush1.msra.mxu0 0.0
          %859 = vmatprep.subr.mxu0 0.0
          %860 = vmatpush1.msra.mxu0 0.0
          %861 = vmatprep.subr.mxu0 0.0
          %862 = vmatpush1.msra.mxu0 0.0
          %863 = vmatprep.subr.mxu0 0.0
          %864 = vmatpush1.msra.mxu0 0.0
          %865 = vmatprep.subr.mxu0 0.0
          %866 = vmatpush1.msra.mxu0 0.0
          %867 = vmatprep.subr.mxu0 0.0
          %868 = vmatpush1.msra.mxu0 0.0
          %869 = vmatprep.subr.mxu0 0.0
          %870 = vmatpush1.msra.mxu0 0.0
          %871 = vmatprep.subr.mxu0 0.0
          %872 = vmatpush1.msra.mxu0 0.0
          %873 = vmatprep.subr.mxu0 0.0
          %874 = vmatpush1.msra.mxu0 0.0
          %875 = vmatprep.subr.mxu0 0.0
          %876 = vmatpush1.msra.mxu0 0.0
          %877 = vmatprep.subr.mxu0 0.0
          %878 = vmatpush1.msra.mxu0 0.0
          %879 = vmatprep.subr.mxu0 0.0
          %880 = vmatpush1.msra.mxu0 0.0
          %881 = vmatprep.subr.mxu0 0.0
          %882 = vmatpush1.msra.mxu0 0.0
          %883 = vmatprep.mubr.f32.mxu0 0.0
          %884 = vmatmul.mubr.f32.gmra.mrb[0].mxu0 %v817
          %v885 = vpop.f32.mrb[0].mxu0
          %v886 = vadd.f32 0.0, %v885
          %v887 = vpop.f32.mrb[0].mxu0
          %888 = vdwg.mxu0
          %v890 = vsel %vm815, %v723, 0
          %892 = vmatprep.subr.mxu0 0.0
          %893 = vmatpush1.msra.mxu0 %v807
          %894 = vmatprep.subr.mxu0 0.0
          %895 = vmatpush1.msra.mxu0 %v808
          %896 = vmatprep.subr.mxu0 0.0
          %897 = vmatpush1.msra.mxu0 %v809
          %898 = vmatprep.subr.mxu0 0.0
          %899 = vmatpush1.msra.mxu0 %v810
          %900 = vmatprep.subr.mxu0 0.0
          %901 = vmatpush1.msra.mxu0 0.0
          %902 = vmatprep.subr.mxu0 0.0
          %903 = vmatpush1.msra.mxu0 0.0
          %904 = vmatprep.subr.mxu0 0.0
          %905 = vmatpush1.msra.mxu0 0.0
          %906 = vmatprep.subr.mxu0 0.0
          %907 = vmatpush1.msra.mxu0 0.0
          %908 = vmatprep.subr.mxu0 0.0
          %909 = vmatpush1.msra.mxu0 0.0
          %910 = vmatprep.subr.mxu0 0.0
          %911 = vmatpush1.msra.mxu0 0.0
          %912 = vmatprep.subr.mxu0 0.0
          %913 = vmatpush1.msra.mxu0 0.0
          %914 = vmatprep.subr.mxu0 0.0
          %915 = vmatpush1.msra.mxu0 0.0
          %916 = vmatprep.subr.mxu0 0.0
          %917 = vmatpush1.msra.mxu0 0.0
          %918 = vmatprep.subr.mxu0 0.0
          %919 = vmatpush1.msra.mxu0 0.0
          %920 = vmatprep.subr.mxu0 0.0
          %921 = vmatpush1.msra.mxu0 0.0
          %922 = vmatprep.subr.mxu0 0.0
          %923 = vmatpush1.msra.mxu0 0.0
          %924 = vmatprep.subr.mxu0 0.0
          %925 = vmatpush1.msra.mxu0 0.0
          %926 = vmatprep.subr.mxu0 0.0
          %927 = vmatpush1.msra.mxu0 0.0
          %928 = vmatprep.subr.mxu0 0.0
          %929 = vmatpush1.msra.mxu0 0.0
          %930 = vmatprep.subr.mxu0 0.0
          %931 = vmatpush1.msra.mxu0 0.0
          %932 = vmatprep.subr.mxu0 0.0
          %933 = vmatpush1.msra.mxu0 0.0
          %934 = vmatprep.subr.mxu0 0.0
          %935 = vmatpush1.msra.mxu0 0.0
          %936 = vmatprep.subr.mxu0 0.0
          %937 = vmatpush1.msra.mxu0 0.0
          %938 = vmatprep.subr.mxu0 0.0
          %939 = vmatpush1.msra.mxu0 0.0
          %940 = vmatprep.subr.mxu0 0.0
          %941 = vmatpush1.msra.mxu0 0.0
          %942 = vmatprep.subr.mxu0 0.0
          %943 = vmatpush1.msra.mxu0 0.0
          %944 = vmatprep.subr.mxu0 0.0
          %945 = vmatpush1.msra.mxu0 0.0
          %946 = vmatprep.subr.mxu0 0.0
          %947 = vmatpush1.msra.mxu0 0.0
          %948 = vmatprep.subr.mxu0 0.0
          %949 = vmatpush1.msra.mxu0 0.0
          %950 = vmatprep.subr.mxu0 0.0
          %951 = vmatpush1.msra.mxu0 0.0
          %952 = vmatprep.subr.mxu0 0.0
          %953 = vmatpush1.msra.mxu0 0.0
          %954 = vmatprep.subr.mxu0 0.0
          %955 = vmatpush1.msra.mxu0 0.0
          %956 = vmatprep.mubr.f32.mxu0 0.0
          %957 = vmatmul.mubr.f32.gmra.mrb[0].mxu0 %v890
          %v958 = vpop.f32.mrb[0].mxu0
          %v959 = vadd.f32 %v886, %v958
          %v960 = vpop.f32.mrb[0].mxu0
          %961 = vdwg.mxu0
          %v962 = vld [vmem:[#allocation14] sm:$0x1]
          %v964 = vlaneseq
          %v965 = vshrl.u32 %v964, 7
          %v966 = vsub.s32 0, %v965
          %v967 = vrot.slane %v962, %v966
          %v969 = vadd.f32 %v959, %v967
          %v970 = vmax.f32 %v969, 0.0
          %v971 = vld [vmem:[%s11] sm:$0xff]
          %v972 = vld [vmem:[%s11 + $0x8] sm:$0xff]
          %v973 = vld [vmem:[%s11 + $0x10] sm:$0xff]
          %v974 = vld [vmem:[%s11 + $0x18] sm:$0xff]
          %v975 = vld [vmem:[%s12] sm:$0x1]
          %v977 = vlaneseq
          %v978 = vshrl.u32 %v977, 7
          %v979 = vsub.s32 0, %v978
          %v980 = vrot.slane %v975, %v979
          %v983 = vsel %vm815, %v970, 0
          %985 = vmatprep.subr.mxu0 0.0
          %986 = vmatpush1.msra.mxu0 %v971
          %987 = vmatprep.subr.mxu0 0.0
          %988 = vmatpush1.msra.mxu0 %v972
          %989 = vmatprep.subr.mxu0 0.0
          %990 = vmatpush1.msra.mxu0 %v973
          %991 = vmatprep.subr.mxu0 0.0
          %992 = vmatpush1.msra.mxu0 %v974
          %993 = vmatprep.subr.mxu0 0.0
          %994 = vmatpush1.msra.mxu0 0.0
          %995 = vmatprep.subr.mxu0 0.0
          %996 = vmatpush1.msra.mxu0 0.0
          %997 = vmatprep.subr.mxu0 0.0
          %998 = vmatpush1.msra.mxu0 0.0
          %999 = vmatprep.subr.mxu0 0.0
          %1000 = vmatpush1.msra.mxu0 0.0
          %1001 = vmatprep.subr.mxu0 0.0
          %1002 = vmatpush1.msra.mxu0 0.0
          %1003 = vmatprep.subr.mxu0 0.0
          %1004 = vmatpush1.msra.mxu0 0.0
          %1005 = vmatprep.subr.mxu0 0.0
          %1006 = vmatpush1.msra.mxu0 0.0
          %1007 = vmatprep.subr.mxu0 0.0
          %1008 = vmatpush1.msra.mxu0 0.0
          %1009 = vmatprep.subr.mxu0 0.0
          %1010 = vmatpush1.msra.mxu0 0.0
          %1011 = vmatprep.subr.mxu0 0.0
          %1012 = vmatpush1.msra.mxu0 0.0
          %1013 = vmatprep.subr.mxu0 0.0
          %1014 = vmatpush1.msra.mxu0 0.0
          %1015 = vmatprep.subr.mxu0 0.0
          %1016 = vmatpush1.msra.mxu0 0.0
          %1017 = vmatprep.subr.mxu0 0.0
          %1018 = vmatpush1.msra.mxu0 0.0
          %1019 = vmatprep.subr.mxu0 0.0
          %1020 = vmatpush1.msra.mxu0 0.0
          %1021 = vmatprep.subr.mxu0 0.0
          %1022 = vmatpush1.msra.mxu0 0.0
          %1023 = vmatprep.subr.mxu0 0.0
          %1024 = vmatpush1.msra.mxu0 0.0
          %1025 = vmatprep.subr.mxu0 0.0
          %1026 = vmatpush1.msra.mxu0 0.0
          %1027 = vmatprep.subr.mxu0 0.0
          %1028 = vmatpush1.msra.mxu0 0.0
          %1029 = vmatprep.subr.mxu0 0.0
          %1030 = vmatpush1.msra.mxu0 0.0
          %1031 = vmatprep.subr.mxu0 0.0
          %1032 = vmatpush1.msra.mxu0 0.0
          %1033 = vmatprep.subr.mxu0 0.0
          %1034 = vmatpush1.msra.mxu0 0.0
          %1035 = vmatprep.subr.mxu0 0.0
          %1036 = vmatpush1.msra.mxu0 0.0
          %1037 = vmatprep.subr.mxu0 0.0
          %1038 = vmatpush1.msra.mxu0 0.0
          %1039 = vmatprep.subr.mxu0 0.0
          %1040 = vmatpush1.msra.mxu0 0.0
          %1041 = vmatprep.subr.mxu0 0.0
          %1042 = vmatpush1.msra.mxu0 0.0
          %1043 = vmatprep.subr.mxu0 0.0
          %1044 = vmatpush1.msra.mxu0 0.0
          %1045 = vmatprep.subr.mxu0 0.0
          %1046 = vmatpush1.msra.mxu0 0.0
          %1047 = vmatprep.subr.mxu0 0.0
          %1048 = vmatpush1.msra.mxu0 0.0
          %1049 = vmatprep.mubr.f32.mxu0 0.0
          %1050 = vmatmul.mubr.f32.gmra.mrb[0].mxu0 %v983
          %v1051 = vpop.f32.mrb[0].mxu0
          %v1052 = vadd.f32 %v980, %v1051
          %v1053 = vpop.f32.mrb[0].mxu0
          %1054 = vdwg.mxu0
          %1055 = vst [vmem:[#allocation15] sm:$0x3] %v1052
        $region108: #{tpu_custom_call.1} parent=71 // pred_fallthru
          _
        // Predicated region
        $region109: #{tpu_custom_call.1} parent=71 // pred_check
          %p1056 = pneg %p327
        $region110: #{tpu_custom_call.1} parent=71 // pred_check_branch
          %1058 = sbr.rel (%p1056) target = $region112
        $region111: #{tpu_custom_call.1} parent=71 // pred_region
          %s1060 = ssub.s32 32, 32
          %1061 = vsyncadd [#allocation5], %s1060
          %s1063 = sshll.u32 [#allocation15], 4
          %s1064 = int_to_ptr.vmem [resolvable:$true] %s1063
          %1066 = dma.vmem_to_hbm [thread:$0]  %s1064, 32, %s13, [#allocation5]
        $region112: #{tpu_custom_call.1} parent=71 // pred_fallthru
          _
        // Predicated region
        $region113: #{tpu_custom_call.1} parent=71 // pred_check
          %p1067 = pneg %p327
        $region114: #{tpu_custom_call.1} parent=71 // pred_check_branch
          %1069 = sbr.rel (%p1067) target = $region116
        $region115: #{tpu_custom_call.1} parent=71 // pred_region
          %1070 = dma.done [#allocation5], 32
        $region116: #{tpu_custom_call.1} parent=71 // pred_fallthru
          _
      $region72: #{tpu_custom_call.1} parent=5 // pred_fallthru
        _
      %p1071 = scmp.le.s32.totalorder 2, %s26
      // Predicated region
      $region117: #{tpu_custom_call.1} parent=5 // pred_check
        %p1072 = pneg %p1071
      $region118: #{tpu_custom_call.1} parent=5 // pred_check_branch
        %1074 = sbr.rel (%p1072) target = $region120
      $region119: #{tpu_custom_call.1} parent=5 // pred_region
        %s1075 = ssub.s32 %s26, 2
      $region120: #{tpu_custom_call.1} parent=5 // pred_fallthru
        _
    $region6: #{tpu_custom_call.1} parent=1 // loop_footer
      %s30 = sadd.s32 1, %s26
    $region7: #{tpu_custom_call.1} parent=1 // loop_footer_branch
      %25 = sbr.rel target = $region3
    $region8: #{tpu_custom_call.1} parent=1 // loop_exit
      _
    %1076 = vsyncpa [#allocation4], 1
    %s1077 = scalar_lea.sflag [#allocation4], 1
    %1078 = vsyncpa %s1077, 1
    %1079 = vsyncpa [#allocation7], 1
    %1080 = vsyncpa [#allocation10], 1
    %1081 = vsyncpa [#allocation13], 1
    %1082 = vsyncpa [#allocation5], 1
    %s1083 = scalar_lea.sflag [#allocation5], 1
    %1084 = vsyncpa %s1083, 1

</llo_original>
